<compile_context>
chip_gen: v5e
topology: v5e:2x2
jax: 0.10.0
libtpu: 0.0.40
codegen_flags: <defaults>
</compile_context>

<pallas_src>
import functools
import math

import jax
import jax.numpy as jnp
from jax import lax
from jax.experimental import pallas as pl
from jax.experimental.pallas import tpu as pltpu

_HEAD_PAD = 128   # lane-dense width of the fused cls/loc output slab


def _layer_norm(v, g, b, eps=1e-5):
    mu = jnp.mean(v, axis=-1, keepdims=True)
    var = jnp.mean((v - mu) ** 2, axis=-1, keepdims=True)
    return (v - mu) * lax.rsqrt(var + eps) * g + b


# --------------------- kernel 1: head-major fused QKV projection ---------------------
def _qkv_kernel(x_ref, w_ref, q_ref, k_ref, v_ref, *, dk):
    x = x_ref[...]                                          # [TR, F]
    w = w_ref[0]                                            # [F, 3*dk], this head
    qkv = jnp.dot(x, w, preferred_element_type=jnp.float32)  # [TR, 3*dk]
    # 128-aligned lane slices when dk is a multiple of 128 (vreg-granular).
    # TODO(synk): for configs with dk < 128, zero-pad dk to 128 in the wrapper
    # (semantically neutral) so the MXU contraction/output tiles stay full.
    q_ref[0] = qkv[:, :dk].astype(q_ref.dtype)
    k_ref[0] = qkv[:, dk:2 * dk].astype(k_ref.dtype)
    v_ref[0] = qkv[:, 2 * dk:].astype(v_ref.dtype)


# ------ kernel 2: flash attention + output projection + residual + LayerNorm1 ------
def _attn_kernel(q_ref, k_ref, v_ref, x_ref, wo_ref, g_ref, b_ref, out_ref,
                 m_sc, l_sc, acc_sc, *, sm_scale):
    ki = pl.program_id(1)

    @pl.when(ki == 0)
    def _():
        m_sc[...] = jnp.full(m_sc.shape, -jnp.inf, m_sc.dtype)
        l_sc[...] = jnp.zeros(l_sc.shape, l_sc.dtype)
        acc_sc[...] = jnp.zeros(acc_sc.shape, acc_sc.dtype)

    q = q_ref[...]                                          # [H, TQ, dk]
    k = k_ref[...]                                          # [H, TK, dk]
    s = jnp.einsum('hqd,hkd->hqk', q, k,
                   preferred_element_type=jnp.float32) * sm_scale
    m_prev = m_sc[...]
    m_new = jnp.maximum(m_prev, jnp.max(s, axis=-1, keepdims=True))
    alpha = jnp.exp(m_prev - m_new)
    p = jnp.exp(s - m_new)
    l_sc[...] = alpha * l_sc[...] + jnp.sum(p, axis=-1, keepdims=True)
    acc_sc[...] = alpha * acc_sc[...] + jnp.einsum(
        'hqk,hkd->hqd', p.astype(v_ref.dtype), v_ref[...],
        preferred_element_type=jnp.float32)
    m_sc[...] = m_new

    @pl.when(ki == pl.num_programs(1) - 1)
    def _():
        o3 = acc_sc[...] * pl.reciprocal(l_sc[...], approx=True)   # [H, TQ, dk]
        # Head-merge folded into the output projection: one batched matmul over
        # heads + a cheap leading-axis sum (keeps dot_general in Mosaic's
        # supported batched-2D form; no in-kernel [h,q,d]->[q,h*d] relayout).
        y = jnp.sum(jnp.einsum('hqd,hdf->hqf', o3.astype(q_ref.dtype), wo_ref[...],
                               preferred_element_type=jnp.float32), axis=0)
        res = y + x_ref[...]                                 # residual with f32 input
        out_ref[...] = _layer_norm(res, g_ref[...], b_ref[...])


# ----------- kernel 3: AvgPool1d per scale via prefix sums (roll + mask) -----------
def _pool_kernel(out_ref, pooled_ref, *, anchor_scales):
    out = out_ref[...]                                      # [L, F] f32
    L, F = out.shape
    row = lax.broadcasted_iota(jnp.int32, (L, F), 0)

    def shift_down(a, n):
        # result[j] = a[j - n] for j >= n else 0: XLU roll + VPU select,
        # no zeros+concatenate materialization.
        if n <= 0:
            return a
        if n >= L:
            return jnp.zeros_like(a)
        return jnp.where(row >= n, pltpu.roll(a, n, axis=0), 0.0)

    # Inclusive prefix sum along time (log-step scan).
    csum = out
    shift = 1
    while shift < L:
        csum = csum + shift_down(csum, shift)
        shift *= 2
    last = csum[L - 1:L, :]                                 # [1, F] total sum

    # TODO(synk): for very long sequences, re-base the prefix sum per row tile
    # (and tile this kernel over L) to avoid f32 cancellation in upper - lower.
    for si, s in enumerate(anchor_scales):
        c = s // 2
        d = s - c
        # AvgPool1d(kernel=s, stride=1, padding=c, count_include_pad=True):
        # window for output j is [j - c, j + d - 1], zeros outside [0, L-1]:
        #   upper[j] = csum[min(j + d - 1, L - 1)], lower[j] = csum[j - c - 1].
        if d > 1:
            up = pltpu.roll(csum, L - (d - 1), axis=0)      # up[j] = csum[(j+d-1) % L]
        else:
            up = csum
        upper = jnp.where(row <= L - d, up, last)
        lower = shift_down(csum, c + 1)
        pooled_ref[si] = ((upper - lower) * (1.0 / s)).astype(pooled_ref.dtype)


# -------- kernel 4: fc1 + Tanh + LayerNorm2 + fused cls/loc heads (row-tiled) --------
def _head_kernel(p_ref, w1_ref, b1_ref, g2_ref, b2_ref, wh_ref, bh_ref, o_ref):
    x = p_ref[0]                                            # [TR, F]
    hid = jnp.tanh(jnp.dot(x, w1_ref[...], preferred_element_type=jnp.float32)
                   + b1_ref[...])
    # fc1 Dropout(0.5) -> identity in eval mode.
    hid = _layer_norm(hid, g2_ref[...], b2_ref[...])        # [TR, Hdim] f32
    head = jnp.dot(hid.astype(wh_ref.dtype), wh_ref[...],
                   preferred_element_type=jnp.float32) + bh_ref[...]   # [TR, 128]
    col = lax.broadcasted_iota(jnp.int32, head.shape, 1)
    sig = pl.reciprocal(1.0 + jnp.exp(-head), approx=True)  # EUP exp + approx recip
    # column 0 = sigmoid(cls logit), columns 1:3 = loc offsets, rest = padding.
    o_ref[0] = jnp.where(col == 0, sig, head)


# --------------------------------- wrapper ---------------------------------
def _tpu_vmem_bytes():
    try:
        info = pltpu.get_tpu_info()
        for name in ("vmem_capacity_bytes", "vmem_bytes", "vmem_size_bytes"):
            v = getattr(info, name, None)
            if v:
                return int(v)
    except Exception:
        pass
    return 64 * 1024 * 1024          # conservative default (v7x physical VMEM)


def _pick_tile(n, target):
    t = max(1, min(n, target))
    while n % t:
        t -= 1
    return t


def dsnet_forward(x, params, anchor_scales, num_head, *,
                  matmul_dtype=jnp.bfloat16,
                  block_q=None, block_kv=None, block_rows=None):
    """x: [1, seq_len, num_feature] -> (pred_cls [L, S], pred_loc [L, S, 2])."""
    assert x.shape[0] == 1
    # The torch.cat in the original forward requires all pooled lengths to match,
    # which holds for even anchor scales (DSNet default is (4, 8, 16, 32)).
    assert all(s % 2 == 0 for s in anchor_scales)

    x2d = x[0]
    L, F = x2d.shape
    S = len(anchor_scales)
    H = num_head
    assert F % H == 0
    dk = F // H
    num_hidden = params['w1'].shape[1]
    md = matmul_dtype

    # Per-generation VMEM limit / tile targets: ~0.75x physical VMEM; smaller kv
    # tiles on 64-MiB v7x, larger on 128-MiB v5e/v6e.
    vmem_cap = _tpu_vmem_bytes()
    vmem_limit = int(vmem_cap * 0.75)
    small_vmem = vmem_cap <= 96 * 1024 * 1024
    tq = block_q or _pick_tile(L, 512)
    tk = block_kv or _pick_tile(L, 512 if small_vmem else 1024)
    tr = block_rows or _pick_tile(L, 256)
    assert L % tq == 0 and L % tk == 0 and L % tr == 0

    # Head-major weight layouts built once in the wrapper (free plumbing) so the
    # kernels never slice / relayout heads in-kernel.
    wqkv_h = jnp.concatenate(
        [params['wq'].reshape(F, H, dk), params['wk'].reshape(F, H, dk),
         params['wv'].reshape(F, H, dk)], axis=2)                 # [F, H, 3*dk]
    wqkv_h = jnp.transpose(wqkv_h, (1, 0, 2)).astype(md)          # [H, F, 3*dk]
    wo3 = params['wo'].reshape(H, dk, F).astype(md)               # [H, dk, F]
    whead = jnp.concatenate(
        [params['wc'], params['wl'],
         jnp.zeros((num_hidden, _HEAD_PAD - 3), jnp.float32)], axis=1).astype(md)
    bhead = jnp.concatenate(
        [params['bc'], params['bl'],
         jnp.zeros((1, _HEAD_PAD - 3), jnp.float32)], axis=1)

    # ---- kernel 1: QKV projection, grid (head, row-block), both parallel ----
    nr = L // tr
    qkv_shape = jax.ShapeDtypeStruct((H, L, dk), md)
    q3, k3, v3 = pl.pallas_call(
        functools.partial(_qkv_kernel, dk=dk),
        out_shape=(qkv_shape, qkv_shape, qkv_shape),
        grid=(H, nr),
        in_specs=[
            pl.BlockSpec((tr, F), lambda h, r: (r, 0)),
            pl.BlockSpec((1, F, 3 * dk), lambda h, r: (h, 0, 0)),
        ],
        out_specs=(
            pl.BlockSpec((1, tr, dk), lambda h, r: (h, r, 0)),
            pl.BlockSpec((1, tr, dk), lambda h, r: (h, r, 0)),
            pl.BlockSpec((1, tr, dk), lambda h, r: (h, r, 0)),
        ),
        compiler_params=pltpu.CompilerParams(
            dimension_semantics=("parallel", "parallel"),
            vmem_limit_bytes=vmem_limit),
    )(x2d.astype(md), wqkv_h)

    # ---- kernel 2: flash attention (+ out-proj, residual, LayerNorm1) ----
    nq, nk = L // tq, L // tk
    out_attn = pl.pallas_call(
        functools.partial(_attn_kernel, sm_scale=1.0 / math.sqrt(dk)),
        out_shape=jax.ShapeDtypeStruct((L, F), jnp.float32),
        grid=(nq, nk),
        in_specs=[
            pl.BlockSpec((H, tq, dk), lambda qi, ki: (0, qi, 0)),
            pl.BlockSpec((H, tk, dk), lambda qi, ki: (0, ki, 0)),
            pl.BlockSpec((H, tk, dk), lambda qi, ki: (0, ki, 0)),
            pl.BlockSpec((tq, F), lambda qi, ki: (qi, 0)),          # residual (f32)
            pl.BlockSpec((H, dk, F), lambda qi, ki: (0, 0, 0)),
            pl.BlockSpec((1, F), lambda qi, ki: (0, 0)),
            pl.BlockSpec((1, F), lambda qi, ki: (0, 0)),
        ],
        out_specs=pl.BlockSpec((tq, F), lambda qi, ki: (qi, 0)),
        scratch_shapes=[
            pltpu.VMEM((H, tq, 1), jnp.float32),
            pltpu.VMEM((H, tq, 1), jnp.float32),
            pltpu.VMEM((H, tq, dk), jnp.float32),
        ],
        compiler_params=pltpu.CompilerParams(
            dimension_semantics=("parallel", "arbitrary"),
            vmem_limit_bytes=vmem_limit),
    )(q3, k3, v3, x2d.astype(jnp.float32), wo3, params['ln1_g'], params['ln1_b'])

    # ---- kernel 3: per-scale AvgPool1d via prefix sums (gridless; O(L*F)) ----
    vmem_full = pl.BlockSpec(memory_space=pltpu.MemorySpace.VMEM)
    pooled = pl.pallas_call(
        functools.partial(_pool_kernel, anchor_scales=tuple(anchor_scales)),
        out_shape=jax.ShapeDtypeStruct((S, L, F), md),
        in_specs=[vmem_full],
        out_specs=vmem_full,
        compiler_params=pltpu.CompilerParams(vmem_limit_bytes=vmem_limit),
    )(out_attn)

    # ---- kernel 4: fc1 + LN2 + fused heads, grid (scale, row-block), parallel ----
    slab = pl.pallas_call(
        _head_kernel,
        out_shape=jax.ShapeDtypeStruct((S, L, _HEAD_PAD), jnp.float32),
        grid=(S, nr),
        in_specs=[
            pl.BlockSpec((1, tr, F), lambda si, r: (si, r, 0)),
            pl.BlockSpec((F, num_hidden), lambda si, r: (0, 0)),
            pl.BlockSpec((1, num_hidden), lambda si, r: (0, 0)),
            pl.BlockSpec((1, num_hidden), lambda si, r: (0, 0)),
            pl.BlockSpec((1, num_hidden), lambda si, r: (0, 0)),
            pl.BlockSpec((num_hidden, _HEAD_PAD), lambda si, r: (0, 0)),
            pl.BlockSpec((1, _HEAD_PAD), lambda si, r: (0, 0)),
        ],
        out_specs=pl.BlockSpec((1, tr, _HEAD_PAD), lambda si, r: (si, r, 0)),
        compiler_params=pltpu.CompilerParams(
            dimension_semantics=("parallel", "parallel"),
            vmem_limit_bytes=vmem_limit),
    )(pooled, params['w1'].astype(md), params['b1'],
      params['ln2_g'], params['ln2_b'], whead, bhead)

    pred_cls = slab[:, :, 0].T                               # [L, S]
    pred_loc = jnp.transpose(slab[:, :, 1:3], (1, 0, 2))     # [L, S, 2]
    return pred_cls, pred_loc


# ------------------------------- reference & params -------------------------------
def dsnet_reference(x, p, anchor_scales, num_head):
    """Plain-JAX (f32) reference mirroring the PyTorch forward (eval mode)."""
    x2d = x[0].astype(jnp.float32)
    L, F = x2d.shape
    dk = F // num_head

    q = (x2d @ p['wq']).reshape(L, num_head, dk).transpose(1, 0, 2)
    k = (x2d @ p['wk']).reshape(L, num_head, dk).transpose(1, 0, 2)
    v = (x2d @ p['wv']).reshape(L, num_head, dk).transpose(1, 0, 2)
    attn = jax.nn.softmax(jnp.einsum('hld,hmd->hlm', q, k) / jnp.sqrt(dk), axis=-1)
    y = jnp.einsum('hlm,hmd->hld', attn, v).transpose(1, 0, 2).reshape(L, F)
    y = y @ p['wo']
    out = _layer_norm(y + x2d, p['ln1_g'], p['ln1_b'])                   # [L, F]

    cls_list, loc_list = [], []
    for s in anchor_scales:
        pad = s // 2
        padded = jnp.pad(out, ((pad, pad), (0, 0)))
        pooled = sum(padded[off:off + L] for off in range(s)) / s        # [L, F]
        hidden = _layer_norm(jnp.tanh(pooled @ p['w1'] + p['b1']),
                             p['ln2_g'], p['ln2_b'])
        cls_list.append(jax.nn.sigmoid(hidden @ p['wc'] + p['bc']))      # [L, 1]
        loc_list.append(hidden @ p['wl'] + p['bl'])                      # [L, 2]
    pred_cls = jnp.concatenate(cls_list, axis=1)
    pred_loc = jnp.stack(loc_list, axis=1)
    return pred_cls, pred_loc


def make_params(key, num_feature, num_hidden):
    ks = jax.random.split(key, 9)
    f, h = num_feature, num_hidden
    n = lambda k, shape, scale: (jax.random.normal(k, shape, jnp.float32) * scale)
    return {
        'wq': n(ks[0], (f, f), 0.08), 'wk': n(ks[1], (f, f), 0.08),
        'wv': n(ks[2], (f, f), 0.08), 'wo': n(ks[3], (f, f), 0.08),
        'ln1_g': jnp.ones((1, f), jnp.float32), 'ln1_b': jnp.zeros((1, f), jnp.float32),
        'w1': n(ks[4], (f, h), 0.1), 'b1': n(ks[5], (1, h), 0.05),
        'ln2_g': jnp.ones((1, h), jnp.float32), 'ln2_b': jnp.zeros((1, h), jnp.float32),
        'wc': n(ks[6], (h, 1), 0.1), 'bc': jnp.zeros((1, 1), jnp.float32),
        'wl': n(ks[7], (h, 2), 0.1), 'bl': n(ks[8], (1, 2), 0.02),
    }


if __name__ == "__main__":
    # Small but TPU-shaped config: batch=1, seq=64, num_feature=256, num_hidden=128,
    # num_head=2 (dk=128, MXU-friendly), anchor_scales=(4, 8).
    seq_len, num_feature, num_hidden, num_head = 64, 256, 128, 2
    anchor_scales = (4, 8)

    key = jax.random.PRNGKey(0)
    kx, kp = jax.random.split(key)
    x = jax.random.normal(kx, (1, seq_len, num_feature), jnp.float32)
    params = make_params(kp, num_feature, num_hidden)

    ref_cls, ref_loc = dsnet_reference(x, params, anchor_scales, num_head)

    # f32-operand pass with small explicit tiles so the flash grid (2 q-blocks x
    # 2 kv-blocks) and the row-tiled projection / head stages are exercised.
    cls32, loc32 = dsnet_forward(x, params, anchor_scales, num_head,
                                 matmul_dtype=jnp.float32,
                                 block_q=32, block_kv=32, block_rows=32)
    cls32, loc32 = jax.block_until_ready((cls32, loc32))
    assert cls32.shape == (seq_len, len(anchor_scales))
    assert loc32.shape == (seq_len, len(anchor_scales), 2)
    assert jnp.allclose(cls32, ref_cls, atol=5e-3, rtol=5e-3), \
        float(jnp.max(jnp.abs(cls32 - ref_cls)))
    assert jnp.allclose(loc32, ref_loc, atol=5e-3, rtol=5e-3), \
        float(jnp.max(jnp.abs(loc32 - ref_loc)))

    # bf16-operand pass (default tiles picked from the chip's VMEM capacity).
    pred_cls, pred_loc = dsnet_forward(x, params, anchor_scales, num_head)
    pred_cls, pred_loc = jax.block_until_ready((pred_cls, pred_loc))
    assert pred_cls.shape == (seq_len, len(anchor_scales))
    assert pred_loc.shape == (seq_len, len(anchor_scales), 2)
    assert jnp.allclose(pred_cls, ref_cls, atol=3e-2, rtol=3e-2)
    assert jnp.allclose(pred_loc, ref_loc, atol=3e-2, rtol=3e-2)

    print("KERNEL_OK")
</pallas_src>

<mosaic_0001>
module attributes {stable_mosaic.version = 11 : i64} {
  func.func @_qkv_kernel(%arg0: i32, %arg1: i32, %arg2: memref<32x256xf32, #tpu.memory_space<vmem>>, %arg3: memref<1x256x384xf32, #tpu.memory_space<vmem>>, %arg4: memref<1x32x128xf32, #tpu.memory_space<vmem>>, %arg5: memref<1x32x128xf32, #tpu.memory_space<vmem>>, %arg6: memref<1x32x128xf32, #tpu.memory_space<vmem>>) attributes {dimension_semantics = [#tpu.dimension_semantics<parallel>, #tpu.dimension_semantics<parallel>], iteration_bounds = array<i64: 2, 2>, scalar_prefetch = 0 : i64, scratch_operands = 0 : i64, tpu.core_type = #tpu.core_type<tc>, window_params = [{transform_indices = @transform_0, window_bounds = array<i64: 32, 256>}, {transform_indices = @transform_1, window_bounds = array<i64: 1, 256, 384>}, {transform_indices = @transform_2, window_bounds = array<i64: 1, 32, 128>}, {transform_indices = @transform_3, window_bounds = array<i64: 1, 32, 128>}, {transform_indices = @transform_4, window_bounds = array<i64: 1, 32, 128>}]} {
    %c0 = arith.constant 0 : index
    %c0_0 = arith.constant 0 : index
    %0 = vector.load %arg2[%c0, %c0_0] : memref<32x256xf32, #tpu.memory_space<vmem>>, vector<32x256xf32>
    %c0_1 = arith.constant 0 : index
    %c0_2 = arith.constant 0 : index
    %c0_3 = arith.constant 0 : index
    %1 = vector.load %arg3[%c0_1, %c0_2, %c0_3] : memref<1x256x384xf32, #tpu.memory_space<vmem>>, vector<1x256x384xf32>
    %2 = vector.shape_cast %1 : vector<1x256x384xf32> to vector<256x384xf32>
    %cst = arith.constant dense<0.000000e+00> : vector<32x384xf32>
    %3 = tpu.matmul %0, %2, %cst {dimension_numbers = #tpu.dot_dimension_numbers<[1], [0], [0], [1], [0, 0, 1, 1], [], []>} : vector<32x256xf32>, vector<256x384xf32>, vector<32x384xf32> -> vector<32x384xf32>
    %4 = vector.extract_strided_slice %3 {offsets = [0, 0], sizes = [32, 128], strides = [1, 1]} : vector<32x384xf32> to vector<32x128xf32>
    %c0_4 = arith.constant 0 : index
    %c0_5 = arith.constant 0 : index
    %c0_6 = arith.constant 0 : index
    %5 = vector.load %arg4[%c0_4, %c0_5, %c0_6] : memref<1x32x128xf32, #tpu.memory_space<vmem>>, vector<1x32x128xf32>
    %6 = vector.shape_cast %5 : vector<1x32x128xf32> to vector<32x128xf32>
    %7 = vector.shape_cast %4 : vector<32x128xf32> to vector<1x32x128xf32>
    tpu.vector_store %arg4[%c0_4, %c0_5, %c0_6], %7 {strides = array<i32>} : memref<1x32x128xf32, #tpu.memory_space<vmem>>, vector<1x32x128xf32>,
    %8 = vector.extract_strided_slice %3 {offsets = [0, 128], sizes = [32, 128], strides = [1, 1]} : vector<32x384xf32> to vector<32x128xf32>
    %c0_7 = arith.constant 0 : index
    %c0_8 = arith.constant 0 : index
    %c0_9 = arith.constant 0 : index
    %9 = vector.load %arg5[%c0_7, %c0_8, %c0_9] : memref<1x32x128xf32, #tpu.memory_space<vmem>>, vector<1x32x128xf32>
    %10 = vector.shape_cast %9 : vector<1x32x128xf32> to vector<32x128xf32>
    %11 = vector.shape_cast %8 : vector<32x128xf32> to vector<1x32x128xf32>
    tpu.vector_store %arg5[%c0_7, %c0_8, %c0_9], %11 {strides = array<i32>} : memref<1x32x128xf32, #tpu.memory_space<vmem>>, vector<1x32x128xf32>,
    %12 = vector.extract_strided_slice %3 {offsets = [0, 256], sizes = [32, 128], strides = [1, 1]} : vector<32x384xf32> to vector<32x128xf32>
    %c0_10 = arith.constant 0 : index
    %c0_11 = arith.constant 0 : index
    %c0_12 = arith.constant 0 : index
    %13 = vector.load %arg6[%c0_10, %c0_11, %c0_12] : memref<1x32x128xf32, #tpu.memory_space<vmem>>, vector<1x32x128xf32>
    %14 = vector.shape_cast %13 : vector<1x32x128xf32> to vector<32x128xf32>
    %15 = vector.shape_cast %12 : vector<32x128xf32> to vector<1x32x128xf32>
    tpu.vector_store %arg6[%c0_10, %c0_11, %c0_12], %15 {strides = array<i32>} : memref<1x32x128xf32, #tpu.memory_space<vmem>>, vector<1x32x128xf32>,
    return
  }
  func.func @transform_0(%arg0: i32, %arg1: i32) -> (i32, i32) {
    %c0_i32 = arith.constant 0 : i32
    %c0_i32_0 = arith.constant 0 : i32
    return %arg1, %c0_i32 : i32, i32
  }
  func.func @transform_1(%arg0: i32, %arg1: i32) -> (i32, i32, i32) {
    %c0_i32 = arith.constant 0 : i32
    %c0_i32_0 = arith.constant 0 : i32
    %c0_i32_1 = arith.constant 0 : i32
    return %arg0, %c0_i32, %c0_i32_0 : i32, i32, i32
  }
  func.func @transform_2(%arg0: i32, %arg1: i32) -> (i32, i32, i32) {
    %c0_i32 = arith.constant 0 : i32
    %c0_i32_0 = arith.constant 0 : i32
    return %arg0, %arg1, %c0_i32 : i32, i32, i32
  }
  func.func @transform_3(%arg0: i32, %arg1: i32) -> (i32, i32, i32) {
    %c0_i32 = arith.constant 0 : i32
    %c0_i32_0 = arith.constant 0 : i32
    return %arg0, %arg1, %c0_i32 : i32, i32, i32
  }
  func.func @transform_4(%arg0: i32, %arg1: i32) -> (i32, i32, i32) {
    %c0_i32 = arith.constant 0 : i32
    %c0_i32_0 = arith.constant 0 : i32
    return %arg0, %arg1, %c0_i32 : i32, i32, i32
  }
}

</mosaic_0001>

<llo_original>
// kernel: tpu_custom_call.1
$region0: #{tpu_custom_call.1}
  #allocation0 [shape = 'u32[]', space=smem, size = 0x4, offset = 0x4, fixed_abs, tag = 'smem constant byte address 0x4 - core index']
  #allocation1 [shape = 'u32[72,128]{1,0:T(1,128)}', space=vmem, size = 0x9000, scoped, tag = 'internal scratch']
  %s0 = inlined_call_operand.hbm [shape: f32[64,256], index: 0, kind: input, shape index: {}]
  %s1 = inlined_call_operand.hbm [shape: f32[2,256,384], index: 1, kind: input, shape index: {}]
  %s2 = inlined_call_operand.hbm [shape: f32[2,64,128], index: 2, kind: output, shape index: {0}]
  %s3 = inlined_call_operand.hbm [shape: f32[2,64,128], index: 3, kind: output, shape index: {1}]
  %s4 = inlined_call_operand.hbm [shape: f32[2,64,128], index: 4, kind: output, shape index: {2}]
  %5 = xla_tuple %s2, %s3, %s4
  %s6 = sld [smem:[#allocation0]]
  $region65: #{tpu_custom_call.1} parent=0
    _
  %s8 = ssub.s32 1, %s6
  %s9 = scalar_select 0, %s8, %s6
  $region1: #{tpu_custom_call.1} parent=0
    #allocation2 [shape = 'u8[65536]{0}', space=vmem, size = 0x10000, scoped, tag = 'input window, operand 0']
    #allocation3 [shape = 's32[2]{0}', space=sflag, size = 0x8, scoped, tag = 'scoped memory for tpu_custom_call.1']
    #allocation4 [shape = 's32[2]{0}', space=sflag, size = 0x8, scoped, tag = 'scoped memory for tpu_custom_call.1']
    #allocation5 [shape = 'u8[786432]{0}', space=vmem, size = 0xc0000, scoped, tag = 'input window, operand 1']
    #allocation6 [shape = 's32[2]{0}', space=sflag, size = 0x8, scoped, tag = 'scoped memory for tpu_custom_call.1']
    #allocation7 [shape = 'u8[32768]{0}', space=vmem, size = 0x8000, scoped, tag = 'output window, operand 0']
    #allocation8 [shape = 'u8[32768]{0}', space=vmem, size = 0x8000, scoped, tag = 'output window, operand 1']
    #allocation9 [shape = 's32[2]{0}', space=sflag, size = 0x8, scoped, tag = 'scoped memory for tpu_custom_call.1']
    #allocation10 [shape = 'u8[32768]{0}', space=vmem, size = 0x8000, scoped, tag = 'output window, operand 2']
    %10 = vsyncpa [#allocation3], 0
    %s11 = scalar_lea.sflag [#allocation3], 1
    %12 = vsyncpa %s11, 0
    %13 = vsyncpa [#allocation6], 0
    %s14 = scalar_lea.sflag [#allocation6], 1
    %15 = vsyncpa %s14, 0
    %16 = vsyncpa [#allocation4], 0
    %s17 = scalar_lea.sflag [#allocation4], 1
    %18 = vsyncpa %s17, 0
    %19 = vsyncpa [#allocation9], 0
    %s20 = scalar_lea.sflag [#allocation9], 1
    %21 = vsyncpa %s20, 0
    loop: start=0, step=1, limit=6
    $region2: #{tpu_custom_call.1} parent=1 // loop_pre_header
      _
    $region3: #{tpu_custom_call.1} parent=1 // loop_header
      %s23 = sphi 0, %s27
      %p24 = scmp.ge.s32.totalorder %s23, 6
      %s30 = sphi 0, %s42
      %s31 = sphi 0, %s38
      %s32 = sphi 0, %s30
      %s33 = sphi 0, %s31
      %s34 = sphi 0, %s32
      %s35 = sphi 0, %s33
      %s45 = sphi 0, %s47
      %s48 = sphi 0, %s45
      %s49 = sphi 0, %s48
      %s65 = sphi 0, %s49
      %s71 = sphi 0, %s73
      %s74 = sphi 0, %s71
      %s75 = sphi 0, %s74
      %s91 = sphi 0, %s75
      %s99 = sphi 0, %s101
      %s102 = sphi 0, %s99
      %s103 = sphi 0, %s102
      %s119 = sphi 0, %s103
      %s127 = sphi 0, %s129
      %s130 = sphi 0, %s127
      %s131 = sphi 0, %s130
      %s147 = sphi 0, %s131
      %s155 = sphi 0, %s157
      %s158 = sphi 0, %s155
      %s159 = sphi 0, %s158
      %s175 = sphi 0, %s159
    $region4: #{tpu_custom_call.1} parent=1 // loop_header_branch
      %26 = sbr.rel (%p24) target = $region8
    $region5: #{tpu_custom_call.1} parent=1 // loop_body
      %s28 = ssub.s32 %s23, 1
      %s29 = ssub.s32 %s23, 2
      %s36 = sadd.s32 1, %s31
      %p37 = scmp.ge.s32.totalorder %s36, 2
      %s38 = scalar_select %p37, 0, %s36
      %s39 = sadd.s32 1, %s30
      %s40 = scalar_select %p37, %s39, %s30
      %p41 = scmp.ge.s32.totalorder %s40, 2
      %s42 = scalar_select %p41, 0, %s40
      %s43 = ssub.s32 %s31, %s38
      %p44 = scmp.eq.s32.totalorder %s43, 0
      %s46 = sadd.s32 %s45, 1
      %s47 = scalar_select %p44, %s45, %s46
      %p50 = pneg %p44
      %p51 = scmp.eq.s32.totalorder %s23, 3
      %p52 = por %p50, %p51
      %p53 = scmp.ne.s32.totalorder %s45, %s48
      %p54 = scmp.eq.s32.totalorder %s23, 0
      %p55 = por %p53, %p54
      %p56 = scmp.ne.s32.totalorder %s45, %s48
      %p57 = scmp.eq.s32.totalorder %s28, 3
      %p58 = por %p56, %p57
      %p59 = scmp.ne.s32.totalorder %s48, %s49
      %p60 = scmp.eq.s32.totalorder %s28, 0
      %p61 = por %p59, %p60
      %p62 = scmp.ne.s32.totalorder %s48, %s49
      %p63 = scmp.eq.s32.totalorder %s29, 3
      %p64 = por %p62, %p63
      %p66 = scmp.ne.s32.totalorder %s49, %s65
      %p67 = scmp.eq.s32.totalorder %s29, 0
      %p68 = por %p66, %p67
      %s69 = ssub.s32 %s30, %s42
      %p70 = scmp.eq.s32.totalorder %s69, 0
      %s72 = sadd.s32 %s71, 1
      %s73 = scalar_select %p70, %s71, %s72
      %p76 = pneg %p70
      %p77 = scmp.eq.s32.totalorder %s23, 3
      %p78 = por %p76, %p77
      %p79 = scmp.ne.s32.totalorder %s71, %s74
      %p80 = scmp.eq.s32.totalorder %s23, 0
      %p81 = por %p79, %p80
      %p82 = scmp.ne.s32.totalorder %s71, %s74
      %p83 = scmp.eq.s32.totalorder %s28, 3
      %p84 = por %p82, %p83
      %p85 = scmp.ne.s32.totalorder %s74, %s75
      %p86 = scmp.eq.s32.totalorder %s28, 0
      %p87 = por %p85, %p86
      %p88 = scmp.ne.s32.totalorder %s74, %s75
      %p89 = scmp.eq.s32.totalorder %s29, 3
      %p90 = por %p88, %p89
      %p92 = scmp.ne.s32.totalorder %s75, %s91
      %p93 = scmp.eq.s32.totalorder %s29, 0
      %p94 = por %p92, %p93
      %s95 = ssub.s32 %s30, %s42
      %s96 = ssub.s32 %s31, %s38
      %s97 = sor.u32 %s95, %s96
      %p98 = scmp.eq.s32.totalorder %s97, 0
      %s100 = sadd.s32 %s99, 1
      %s101 = scalar_select %p98, %s99, %s100
      %p104 = pneg %p98
      %p105 = scmp.eq.s32.totalorder %s23, 3
      %p106 = por %p104, %p105
      %p107 = scmp.ne.s32.totalorder %s99, %s102
      %p108 = scmp.eq.s32.totalorder %s23, 0
      %p109 = por %p107, %p108
      %p110 = scmp.ne.s32.totalorder %s99, %s102
      %p111 = scmp.eq.s32.totalorder %s28, 3
      %p112 = por %p110, %p111
      %p113 = scmp.ne.s32.totalorder %s102, %s103
      %p114 = scmp.eq.s32.totalorder %s28, 0
      %p115 = por %p113, %p114
      %p116 = scmp.ne.s32.totalorder %s102, %s103
      %p117 = scmp.eq.s32.totalorder %s29, 3
      %p118 = por %p116, %p117
      %p120 = scmp.ne.s32.totalorder %s103, %s119
      %p121 = scmp.eq.s32.totalorder %s29, 0
      %p122 = por %p120, %p121
      %s123 = ssub.s32 %s30, %s42
      %s124 = ssub.s32 %s31, %s38
      %s125 = sor.u32 %s123, %s124
      %p126 = scmp.eq.s32.totalorder %s125, 0
      %s128 = sadd.s32 %s127, 1
      %s129 = scalar_select %p126, %s127, %s128
      %p132 = pneg %p126
      %p133 = scmp.eq.s32.totalorder %s23, 3
      %p134 = por %p132, %p133
      %p135 = scmp.ne.s32.totalorder %s127, %s130
      %p136 = scmp.eq.s32.totalorder %s23, 0
      %p137 = por %p135, %p136
      %p138 = scmp.ne.s32.totalorder %s127, %s130
      %p139 = scmp.eq.s32.totalorder %s28, 3
      %p140 = por %p138, %p139
      %p141 = scmp.ne.s32.totalorder %s130, %s131
      %p142 = scmp.eq.s32.totalorder %s28, 0
      %p143 = por %p141, %p142
      %p144 = scmp.ne.s32.totalorder %s130, %s131
      %p145 = scmp.eq.s32.totalorder %s29, 3
      %p146 = por %p144, %p145
      %p148 = scmp.ne.s32.totalorder %s131, %s147
      %p149 = scmp.eq.s32.totalorder %s29, 0
      %p150 = por %p148, %p149
      %s151 = ssub.s32 %s30, %s42
      %s152 = ssub.s32 %s31, %s38
      %s153 = sor.u32 %s151, %s152
      %p154 = scmp.eq.s32.totalorder %s153, 0
      %s156 = sadd.s32 %s155, 1
      %s157 = scalar_select %p154, %s155, %s156
      %p160 = pneg %p154
      %p161 = scmp.eq.s32.totalorder %s23, 3
      %p162 = por %p160, %p161
      %p163 = scmp.ne.s32.totalorder %s155, %s158
      %p164 = scmp.eq.s32.totalorder %s23, 0
      %p165 = por %p163, %p164
      %p166 = scmp.ne.s32.totalorder %s155, %s158
      %p167 = scmp.eq.s32.totalorder %s28, 3
      %p168 = por %p166, %p167
      %p169 = scmp.ne.s32.totalorder %s158, %s159
      %p170 = scmp.eq.s32.totalorder %s28, 0
      %p171 = por %p169, %p170
      %p172 = scmp.ne.s32.totalorder %s158, %s159
      %p173 = scmp.eq.s32.totalorder %s29, 3
      %p174 = por %p172, %p173
      %p176 = scmp.ne.s32.totalorder %s159, %s175
      %p177 = scmp.eq.s32.totalorder %s29, 0
      %p178 = por %p176, %p177
      %p179 = scmp.le.s32.totalorder 1, %s23
      %p180 = scmp.lt.s32.totalorder %s23, 5
      %p181 = pnand %p179, %p180
      %p182 = pneg %p181
      // Predicated region
      $region9: #{tpu_custom_call.1} parent=5 // pred_check
        _
      $region10: #{tpu_custom_call.1} parent=5 // pred_check_branch
        %184 = sbr.rel (%p181) target = $region12
      $region11: #{tpu_custom_call.1} parent=5 // pred_region
        %s185 = ssub.s32 %s23, 1
      $region12: #{tpu_custom_call.1} parent=5 // pred_fallthru
        _
      %p186 = scmp.lt.s32.totalorder %s23, 4
      // Predicated region
      $region13: #{tpu_custom_call.1} parent=5 // pred_check
        %p187 = pneg %p186
      $region14: #{tpu_custom_call.1} parent=5 // pred_check_branch
        %189 = sbr.rel (%p187) target = $region16
      $region15: #{tpu_custom_call.1} parent=5 // pred_region
        // Predicated region
        $region17: #{tpu_custom_call.1} parent=15 // pred_check
          %p190 = pneg %p55
        $region18: #{tpu_custom_call.1} parent=15 // pred_check_branch
          %192 = sbr.rel (%p190) target = $region20
        $region19: #{tpu_custom_call.1} parent=15 // pred_region
          %s193 = sand.u32 %s45, 1
          %s194 = scalar_lea.sflag [#allocation3], %s193
          %s195 = sand.u32 %s45, 1
          %s196 = smul.addr %s195, 64
          %s197 = scalar_lea.vmem [#allocation2], %s196
          %s198 = smul.u32 4, %s31
          %200 = vsyncadd %s194, 0
          %s201 = smul.addr %s198, 2
          %s202 = smul.addr %s201, 8
          %s203 = scalar_lea.hbm %s0, %s202
          %s204 = sshll.u32 %s203, 4
          %s205 = int_to_ptr.hbm [resolvable:$true] %s204
          %s206 = sshll.u32 %s197, 4
          %s207 = int_to_ptr.vmem [resolvable:$true] %s206
          %212 = dma.hbm_to_vmem [thread:$0]  %s205, 1024, %s207, %s194, 256, 256, 16
        $region20: #{tpu_custom_call.1} parent=15 // pred_fallthru
          _
        // Predicated region
        $region21: #{tpu_custom_call.1} parent=15 // pred_check
          %p213 = pneg %p81
        $region22: #{tpu_custom_call.1} parent=15 // pred_check_branch
          %215 = sbr.rel (%p213) target = $region24
        $region23: #{tpu_custom_call.1} parent=15 // pred_region
          %s216 = sand.u32 %s71, 1
          %s217 = scalar_lea.sflag [#allocation6], %s216
          %s218 = sand.u32 %s71, 1
          %s219 = smul.addr %s218, 768
          %s220 = scalar_lea.vmem [#allocation5], %s219
          %222 = vsyncadd %s217, 0
          %s223 = smul.addr %s30, 96
          %s224 = smul.addr %s223, 8
          %s225 = scalar_lea.hbm %s1, %s224
          %s226 = sshll.u32 %s225, 4
          %s227 = int_to_ptr.hbm [resolvable:$true] %s226
          %s228 = sshll.u32 %s220, 4
          %s229 = int_to_ptr.vmem [resolvable:$true] %s228
          %234 = dma.hbm_to_vmem [thread:$0]  %s227, 12288, %s229, %s217, 384, 384, 24
        $region24: #{tpu_custom_call.1} parent=15 // pred_fallthru
          _
      $region16: #{tpu_custom_call.1} parent=5 // pred_fallthru
        _
      %p235 = scmp.le.s32.totalorder 1, %s23
      %p236 = scmp.lt.s32.totalorder %s23, 5
      %p237 = pnand %p235, %p236
      %p238 = pneg %p237
      // Predicated region
      $region25: #{tpu_custom_call.1} parent=5 // pred_check
        _
      $region26: #{tpu_custom_call.1} parent=5 // pred_check_branch
        %240 = sbr.rel (%p237) target = $region28
      $region27: #{tpu_custom_call.1} parent=5 // pred_region
        %s241 = ssub.s32 %s23, 1
        %s242 = sand.u32 %s48, 1
        %s243 = scalar_lea.sflag [#allocation3], %s242
        %s244 = sand.u32 %s48, 1
        %s245 = smul.addr %s244, 64
        %s246 = scalar_lea.vmem [#allocation2], %s245
        // Predicated region
        $region29: #{tpu_custom_call.1} parent=27 // pred_check
          %p247 = pneg %p61
        $region30: #{tpu_custom_call.1} parent=27 // pred_check_branch
          %249 = sbr.rel (%p247) target = $region32
        $region31: #{tpu_custom_call.1} parent=27 // pred_region
          %251 = dma.done %s243, 1024
        $region32: #{tpu_custom_call.1} parent=27 // pred_fallthru
          _
        %s252 = sand.u32 %s74, 1
        %s253 = scalar_lea.sflag [#allocation6], %s252
        %s254 = sand.u32 %s74, 1
        %s255 = smul.addr %s254, 768
        %s256 = scalar_lea.vmem [#allocation5], %s255
        // Predicated region
        $region33: #{tpu_custom_call.1} parent=27 // pred_check
          %p257 = pneg %p87
        $region34: #{tpu_custom_call.1} parent=27 // pred_check_branch
          %259 = sbr.rel (%p257) target = $region36
        $region35: #{tpu_custom_call.1} parent=27 // pred_region
          %261 = dma.done %s253, 12288
        $region36: #{tpu_custom_call.1} parent=27 // pred_fallthru
          _
        %s262 = sand.u32 %s48, 1
        %s263 = scalar_lea.sflag [#allocation3], %s262
        %s264 = sand.u32 %s48, 1
        %s265 = smul.addr %s264, 64
        %s266 = scalar_lea.vmem [#allocation2], %s265
        %p267 = pneg %p61
        %p268 = pneg %p58
        %s269 = sand.u32 %s74, 1
        %s270 = scalar_lea.sflag [#allocation6], %s269
        %s271 = sand.u32 %s74, 1
        %s272 = smul.addr %s271, 768
        %s273 = scalar_lea.vmem [#allocation5], %s272
        %p274 = pneg %p87
        %p275 = pneg %p84
        %p276 = pneg %p115
        %p277 = pneg %p112
        %s278 = sand.u32 %s102, 1
        %s279 = scalar_lea.sflag [#allocation4], %s278
        %s280 = sand.u32 %s102, 1
        %s281 = smul.addr %s280, 32
        %s282 = scalar_lea.vmem [#allocation7], %s281
        %p283 = pneg %p143
        %p284 = pneg %p140
        %s285 = sand.u32 %s28, 1
        %s286 = scalar_lea.sflag [#allocation9], %s285
        %s287 = sand.u32 %s130, 1
        %s288 = smul.addr %s287, 32
        %s289 = scalar_lea.vmem [#allocation8], %s288
        %p290 = pneg %p171
        %p291 = pneg %p168
        %s292 = sand.u32 %s28, 1
        %s293 = scalar_lea.sflag [#allocation9], %s292
        %s294 = sand.u32 %s158, 1
        %s295 = smul.addr %s294, 32
        %s296 = scalar_lea.vmem [#allocation10], %s295
        %s297 = smul.u32 4, %s33
        %s298 = smul.u32 4, %s33
        %s299 = smul.u32 4, %s33
        %s300 = smul.u32 4, %s33
        %v301 = vld [vmem:[%s246] sm:$0xff]
        %v302 = vld [vmem:[%s246 + $0x8] sm:$0xff]
        %v303 = vld [vmem:[%s246 + $0x10] sm:$0xff]
        %v304 = vld [vmem:[%s246 + $0x18] sm:$0xff]
        %v305 = vld [vmem:[%s246 + $0x20] sm:$0xff]
        %v306 = vld [vmem:[%s246 + $0x28] sm:$0xff]
        %v307 = vld [vmem:[%s246 + $0x30] sm:$0xff]
        %v308 = vld [vmem:[%s246 + $0x38] sm:$0xff]
        %v309 = vld [vmem:[%s256] sm:$0xff]
        %v310 = vld [vmem:[%s256 + $0x8] sm:$0xff]
        %v311 = vld [vmem:[%s256 + $0x10] sm:$0xff]
        %v312 = vld [vmem:[%s256 + $0x18] sm:$0xff]
        %v313 = vld [vmem:[%s256 + $0x20] sm:$0xff]
        %v314 = vld [vmem:[%s256 + $0x28] sm:$0xff]
        %v315 = vld [vmem:[%s256 + $0x30] sm:$0xff]
        %v316 = vld [vmem:[%s256 + $0x38] sm:$0xff]
        %v317 = vld [vmem:[%s256 + $0x40] sm:$0xff]
        %v318 = vld [vmem:[%s256 + $0x48] sm:$0xff]
        %v319 = vld [vmem:[%s256 + $0x50] sm:$0xff]
        %v320 = vld [vmem:[%s256 + $0x58] sm:$0xff]
        %v321 = vld [vmem:[%s256 + $0x60] sm:$0xff]
        %v322 = vld [vmem:[%s256 + $0x68] sm:$0xff]
        %v323 = vld [vmem:[%s256 + $0x70] sm:$0xff]
        %v324 = vld [vmem:[%s256 + $0x78] sm:$0xff]
        %v325 = vld [vmem:[%s256 + $0x80] sm:$0xff]
        %v326 = vld [vmem:[%s256 + $0x88] sm:$0xff]
        %v327 = vld [vmem:[%s256 + $0x90] sm:$0xff]
        %v328 = vld [vmem:[%s256 + $0x98] sm:$0xff]
        %v329 = vld [vmem:[%s256 + $0xa0] sm:$0xff]
        %v330 = vld [vmem:[%s256 + $0xa8] sm:$0xff]
        %v331 = vld [vmem:[%s256 + $0xb0] sm:$0xff]
        %v332 = vld [vmem:[%s256 + $0xb8] sm:$0xff]
        %v333 = vld [vmem:[%s256 + $0xc0] sm:$0xff]
        %v334 = vld [vmem:[%s256 + $0xc8] sm:$0xff]
        %v335 = vld [vmem:[%s256 + $0xd0] sm:$0xff]
        %v336 = vld [vmem:[%s256 + $0xd8] sm:$0xff]
        %v337 = vld [vmem:[%s256 + $0xe0] sm:$0xff]
        %v338 = vld [vmem:[%s256 + $0xe8] sm:$0xff]
        %v339 = vld [vmem:[%s256 + $0xf0] sm:$0xff]
        %v340 = vld [vmem:[%s256 + $0xf8] sm:$0xff]
        %v341 = vld [vmem:[%s256 + $0x100] sm:$0xff]
        %v342 = vld [vmem:[%s256 + $0x108] sm:$0xff]
        %v343 = vld [vmem:[%s256 + $0x110] sm:$0xff]
        %v344 = vld [vmem:[%s256 + $0x118] sm:$0xff]
        %v345 = vld [vmem:[%s256 + $0x120] sm:$0xff]
        %v346 = vld [vmem:[%s256 + $0x128] sm:$0xff]
        %v347 = vld [vmem:[%s256 + $0x130] sm:$0xff]
        %v348 = vld [vmem:[%s256 + $0x138] sm:$0xff]
        %v349 = vld [vmem:[%s256 + $0x140] sm:$0xff]
        %v350 = vld [vmem:[%s256 + $0x148] sm:$0xff]
        %v351 = vld [vmem:[%s256 + $0x150] sm:$0xff]
        %v352 = vld [vmem:[%s256 + $0x158] sm:$0xff]
        %v353 = vld [vmem:[%s256 + $0x160] sm:$0xff]
        %v354 = vld [vmem:[%s256 + $0x168] sm:$0xff]
        %v355 = vld [vmem:[%s256 + $0x170] sm:$0xff]
        %v356 = vld [vmem:[%s256 + $0x178] sm:$0xff]
        %v357 = vld [vmem:[%s256 + $0x180] sm:$0xff]
        %v358 = vld [vmem:[%s256 + $0x188] sm:$0xff]
        %v359 = vld [vmem:[%s256 + $0x190] sm:$0xff]
        %v360 = vld [vmem:[%s256 + $0x198] sm:$0xff]
        %v361 = vld [vmem:[%s256 + $0x1a0] sm:$0xff]
        %v362 = vld [vmem:[%s256 + $0x1a8] sm:$0xff]
        %v363 = vld [vmem:[%s256 + $0x1b0] sm:$0xff]
        %v364 = vld [vmem:[%s256 + $0x1b8] sm:$0xff]
        %v365 = vld [vmem:[%s256 + $0x1c0] sm:$0xff]
        %v366 = vld [vmem:[%s256 + $0x1c8] sm:$0xff]
        %v367 = vld [vmem:[%s256 + $0x1d0] sm:$0xff]
        %v368 = vld [vmem:[%s256 + $0x1d8] sm:$0xff]
        %v369 = vld [vmem:[%s256 + $0x1e0] sm:$0xff]
        %v370 = vld [vmem:[%s256 + $0x1e8] sm:$0xff]
        %v371 = vld [vmem:[%s256 + $0x1f0] sm:$0xff]
        %v372 = vld [vmem:[%s256 + $0x1f8] sm:$0xff]
        %v373 = vld [vmem:[%s256 + $0x200] sm:$0xff]
        %v374 = vld [vmem:[%s256 + $0x208] sm:$0xff]
        %v375 = vld [vmem:[%s256 + $0x210] sm:$0xff]
        %v376 = vld [vmem:[%s256 + $0x218] sm:$0xff]
        %v377 = vld [vmem:[%s256 + $0x220] sm:$0xff]
        %v378 = vld [vmem:[%s256 + $0x228] sm:$0xff]
        %v379 = vld [vmem:[%s256 + $0x230] sm:$0xff]
        %v380 = vld [vmem:[%s256 + $0x238] sm:$0xff]
        %v381 = vld [vmem:[%s256 + $0x240] sm:$0xff]
        %v382 = vld [vmem:[%s256 + $0x248] sm:$0xff]
        %v383 = vld [vmem:[%s256 + $0x250] sm:$0xff]
        %v384 = vld [vmem:[%s256 + $0x258] sm:$0xff]
        %v385 = vld [vmem:[%s256 + $0x260] sm:$0xff]
        %v386 = vld [vmem:[%s256 + $0x268] sm:$0xff]
        %v387 = vld [vmem:[%s256 + $0x270] sm:$0xff]
        %v388 = vld [vmem:[%s256 + $0x278] sm:$0xff]
        %v389 = vld [vmem:[%s256 + $0x280] sm:$0xff]
        %v390 = vld [vmem:[%s256 + $0x288] sm:$0xff]
        %v391 = vld [vmem:[%s256 + $0x290] sm:$0xff]
        %v392 = vld [vmem:[%s256 + $0x298] sm:$0xff]
        %v393 = vld [vmem:[%s256 + $0x2a0] sm:$0xff]
        %v394 = vld [vmem:[%s256 + $0x2a8] sm:$0xff]
        %v395 = vld [vmem:[%s256 + $0x2b0] sm:$0xff]
        %v396 = vld [vmem:[%s256 + $0x2b8] sm:$0xff]
        %v397 = vld [vmem:[%s256 + $0x2c0] sm:$0xff]
        %v398 = vld [vmem:[%s256 + $0x2c8] sm:$0xff]
        %v399 = vld [vmem:[%s256 + $0x2d0] sm:$0xff]
        %v400 = vld [vmem:[%s256 + $0x2d8] sm:$0xff]
        %v401 = vld [vmem:[%s256 + $0x2e0] sm:$0xff]
        %v402 = vld [vmem:[%s256 + $0x2e8] sm:$0xff]
        %v403 = vld [vmem:[%s256 + $0x2f0] sm:$0xff]
        %v404 = vld [vmem:[%s256 + $0x2f8] sm:$0xff]
        %405 = vmatpush.msra.mxu0 %v354
        %406 = vmatpush.msra.mxu0 %v351
        %407 = vmatpush.msra.mxu0 %v348
        %408 = vmatpush.msra.mxu0 %v345
        %409 = vmatpush.msra.mxu0 %v342
        %410 = vmatpush.msra.mxu0 %v339
        %411 = vmatpush.msra.mxu0 %v336
        %412 = vmatpush.msra.mxu0 %v333
        %413 = vmatpush.msra.mxu0 %v330
        %414 = vmatpush.msra.mxu0 %v327
        %415 = vmatpush.msra.mxu0 %v324
        %416 = vmatpush.msra.mxu0 %v321
        %417 = vmatpush.msra.mxu0 %v318
        %418 = vmatpush.msra.mxu0 %v315
        %419 = vmatpush.msra.mxu0 %v312
        %420 = vmatpush.msra.mxu0 %v309
        %421 = vmatmul.f32.gmra.mxu0 %v301
        %v422 = vpop.f32.mrf.mxu0
        %v423 = vadd.f32 0.0, %v422
        %424 = vmatmul.f32.gmra.mxu0 %v303
        %v425 = vpop.f32.mrf.mxu0
        %v426 = vadd.f32 0.0, %v425
        %427 = vmatmul.f32.gmra.mxu0 %v305
        %v428 = vpop.f32.mrf.mxu0
        %v429 = vadd.f32 0.0, %v428
        %430 = vmatmul.f32.gmra.mxu0 %v307
        %v431 = vpop.f32.mrf.mxu0
        %v432 = vadd.f32 0.0, %v431
        %433 = vdwg.mxu0
        %434 = vmatpush.msra.mxu0 %v402
        %435 = vmatpush.msra.mxu0 %v399
        %436 = vmatpush.msra.mxu0 %v396
        %437 = vmatpush.msra.mxu0 %v393
        %438 = vmatpush.msra.mxu0 %v390
        %439 = vmatpush.msra.mxu0 %v387
        %440 = vmatpush.msra.mxu0 %v384
        %441 = vmatpush.msra.mxu0 %v381
        %442 = vmatpush.msra.mxu0 %v378
        %443 = vmatpush.msra.mxu0 %v375
        %444 = vmatpush.msra.mxu0 %v372
        %445 = vmatpush.msra.mxu0 %v369
        %446 = vmatpush.msra.mxu0 %v366
        %447 = vmatpush.msra.mxu0 %v363
        %448 = vmatpush.msra.mxu0 %v360
        %449 = vmatpush.msra.mxu0 %v357
        %450 = vmatmul.f32.gmra.mxu0 %v302
        %v451 = vpop.f32.mrf.mxu0
        %v452 = vadd.f32 %v423, %v451
        %453 = vmatmul.f32.gmra.mxu0 %v304
        %v454 = vpop.f32.mrf.mxu0
        %v455 = vadd.f32 %v426, %v454
        %456 = vmatmul.f32.gmra.mxu0 %v306
        %v457 = vpop.f32.mrf.mxu0
        %v458 = vadd.f32 %v429, %v457
        %459 = vmatmul.f32.gmra.mxu0 %v308
        %v460 = vpop.f32.mrf.mxu0
        %v461 = vadd.f32 %v432, %v460
        %462 = vdwg.mxu0
        %463 = vmatpush.msra.mxu0 %v355
        %464 = vmatpush.msra.mxu0 %v352
        %465 = vmatpush.msra.mxu0 %v349
        %466 = vmatpush.msra.mxu0 %v346
        %467 = vmatpush.msra.mxu0 %v343
        %468 = vmatpush.msra.mxu0 %v340
        %469 = vmatpush.msra.mxu0 %v337
        %470 = vmatpush.msra.mxu0 %v334
        %471 = vmatpush.msra.mxu0 %v331
        %472 = vmatpush.msra.mxu0 %v328
        %473 = vmatpush.msra.mxu0 %v325
        %474 = vmatpush.msra.mxu0 %v322
        %475 = vmatpush.msra.mxu0 %v319
        %476 = vmatpush.msra.mxu0 %v316
        %477 = vmatpush.msra.mxu0 %v313
        %478 = vmatpush.msra.mxu0 %v310
        %479 = vmatmul.f32.gmra.mxu0 %v301
        %v480 = vpop.f32.mrf.mxu0
        %v481 = vadd.f32 0.0, %v480
        %482 = vmatmul.f32.gmra.mxu0 %v303
        %v483 = vpop.f32.mrf.mxu0
        %v484 = vadd.f32 0.0, %v483
        %485 = vmatmul.f32.gmra.mxu0 %v305
        %v486 = vpop.f32.mrf.mxu0
        %v487 = vadd.f32 0.0, %v486
        %488 = vmatmul.f32.gmra.mxu0 %v307
        %v489 = vpop.f32.mrf.mxu0
        %v490 = vadd.f32 0.0, %v489
        %491 = vdwg.mxu0
        %492 = vmatpush.msra.mxu0 %v403
        %493 = vmatpush.msra.mxu0 %v400
        %494 = vmatpush.msra.mxu0 %v397
        %495 = vmatpush.msra.mxu0 %v394
        %496 = vmatpush.msra.mxu0 %v391
        %497 = vmatpush.msra.mxu0 %v388
        %498 = vmatpush.msra.mxu0 %v385
        %499 = vmatpush.msra.mxu0 %v382
        %500 = vmatpush.msra.mxu0 %v379
        %501 = vmatpush.msra.mxu0 %v376
        %502 = vmatpush.msra.mxu0 %v373
        %503 = vmatpush.msra.mxu0 %v370
        %504 = vmatpush.msra.mxu0 %v367
        %505 = vmatpush.msra.mxu0 %v364
        %506 = vmatpush.msra.mxu0 %v361
        %507 = vmatpush.msra.mxu0 %v358
        %508 = vmatmul.f32.gmra.mxu0 %v302
        %v509 = vpop.f32.mrf.mxu0
        %v510 = vadd.f32 %v481, %v509
        %511 = vmatmul.f32.gmra.mxu0 %v304
        %v512 = vpop.f32.mrf.mxu0
        %v513 = vadd.f32 %v484, %v512
        %514 = vmatmul.f32.gmra.mxu0 %v306
        %v515 = vpop.f32.mrf.mxu0
        %v516 = vadd.f32 %v487, %v515
        %517 = vmatmul.f32.gmra.mxu0 %v308
        %v518 = vpop.f32.mrf.mxu0
        %v519 = vadd.f32 %v490, %v518
        %520 = vdwg.mxu0
        %521 = vmatpush.msra.mxu0 %v356
        %522 = vmatpush.msra.mxu0 %v353
        %523 = vmatpush.msra.mxu0 %v350
        %524 = vmatpush.msra.mxu0 %v347
        %525 = vmatpush.msra.mxu0 %v344
        %526 = vmatpush.msra.mxu0 %v341
        %527 = vmatpush.msra.mxu0 %v338
        %528 = vmatpush.msra.mxu0 %v335
        %529 = vmatpush.msra.mxu0 %v332
        %530 = vmatpush.msra.mxu0 %v329
        %531 = vmatpush.msra.mxu0 %v326
        %532 = vmatpush.msra.mxu0 %v323
        %533 = vmatpush.msra.mxu0 %v320
        %534 = vmatpush.msra.mxu0 %v317
        %535 = vmatpush.msra.mxu0 %v314
        %536 = vmatpush.msra.mxu0 %v311
        %537 = vmatmul.f32.gmra.mxu0 %v301
        %v538 = vpop.f32.mrf.mxu0
        %v539 = vadd.f32 0.0, %v538
        %540 = vmatmul.f32.gmra.mxu0 %v303
        %v541 = vpop.f32.mrf.mxu0
        %v542 = vadd.f32 0.0, %v541
        %543 = vmatmul.f32.gmra.mxu0 %v305
        %v544 = vpop.f32.mrf.mxu0
        %v545 = vadd.f32 0.0, %v544
        %546 = vmatmul.f32.gmra.mxu0 %v307
        %v547 = vpop.f32.mrf.mxu0
        %v548 = vadd.f32 0.0, %v547
        %549 = vdwg.mxu0
        %550 = vmatpush.msra.mxu0 %v404
        %551 = vmatpush.msra.mxu0 %v401
        %552 = vmatpush.msra.mxu0 %v398
        %553 = vmatpush.msra.mxu0 %v395
        %554 = vmatpush.msra.mxu0 %v392
        %555 = vmatpush.msra.mxu0 %v389
        %556 = vmatpush.msra.mxu0 %v386
        %557 = vmatpush.msra.mxu0 %v383
        %558 = vmatpush.msra.mxu0 %v380
        %559 = vmatpush.msra.mxu0 %v377
        %560 = vmatpush.msra.mxu0 %v374
        %561 = vmatpush.msra.mxu0 %v371
        %562 = vmatpush.msra.mxu0 %v368
        %563 = vmatpush.msra.mxu0 %v365
        %564 = vmatpush.msra.mxu0 %v362
        %565 = vmatpush.msra.mxu0 %v359
        %566 = vmatmul.f32.gmra.mxu0 %v302
        %v567 = vpop.f32.mrf.mxu0
        %v568 = vadd.f32 %v539, %v567
        %569 = vmatmul.f32.gmra.mxu0 %v304
        %v570 = vpop.f32.mrf.mxu0
        %v571 = vadd.f32 %v542, %v570
        %572 = vmatmul.f32.gmra.mxu0 %v306
        %v573 = vpop.f32.mrf.mxu0
        %v574 = vadd.f32 %v545, %v573
        %575 = vmatmul.f32.gmra.mxu0 %v308
        %v576 = vpop.f32.mrf.mxu0
        %v577 = vadd.f32 %v548, %v576
        %578 = vdwg.mxu0
        %579 = vst [vmem:[%s282] sm:$0xff] %v452
        %580 = vst [vmem:[%s282 + $0x8] sm:$0xff] %v455
        %581 = vst [vmem:[%s282 + $0x10] sm:$0xff] %v458
        %582 = vst [vmem:[%s282 + $0x18] sm:$0xff] %v461
        %583 = vst [vmem:[%s289] sm:$0xff] %v510
        %584 = vst [vmem:[%s289 + $0x8] sm:$0xff] %v513
        %585 = vst [vmem:[%s289 + $0x10] sm:$0xff] %v516
        %586 = vst [vmem:[%s289 + $0x18] sm:$0xff] %v519
        %587 = vst [vmem:[%s296] sm:$0xff] %v568
        %588 = vst [vmem:[%s296 + $0x8] sm:$0xff] %v571
        %589 = vst [vmem:[%s296 + $0x10] sm:$0xff] %v574
        %590 = vst [vmem:[%s296 + $0x18] sm:$0xff] %v577
        %s591 = sand.u32 %s102, 1
        %s592 = scalar_lea.sflag [#allocation4], %s591
        %s593 = sand.u32 %s102, 1
        %s594 = smul.addr %s593, 32
        %s595 = scalar_lea.vmem [#allocation7], %s594
        %s596 = sand.u32 %s28, 1
        %s597 = scalar_lea.sflag [#allocation9], %s596
        %s598 = sand.u32 %s130, 1
        %s599 = smul.addr %s598, 32
        %s600 = scalar_lea.vmem [#allocation8], %s599
        %s601 = sand.u32 %s28, 1
        %s602 = scalar_lea.sflag [#allocation9], %s601
        %s603 = sand.u32 %s158, 1
        %s604 = smul.addr %s603, 32
        %s605 = scalar_lea.vmem [#allocation10], %s604
        // Predicated region
        $region37: #{tpu_custom_call.1} parent=27 // pred_check
          %p606 = pneg %p112
        $region38: #{tpu_custom_call.1} parent=27 // pred_check_branch
          %608 = sbr.rel (%p606) target = $region40
        $region39: #{tpu_custom_call.1} parent=27 // pred_region
          %s609 = smul.u32 4, %s33
          %611 = vsyncadd %s592, 0
          %s612 = smul.addr %s32, 8
          %s613 = sadd.s32 %s609, %s612
          %s614 = smul.addr %s613, 8
          %s615 = scalar_lea.hbm %s2, %s614
          %s616 = sshll.u32 %s595, 4
          %s617 = int_to_ptr.vmem [resolvable:$true] %s616
          %s618 = sshll.u32 %s615, 4
          %s619 = int_to_ptr.hbm [resolvable:$true] %s618
          %624 = dma.vmem_to_hbm [thread:$0]  %s617, 512, %s619, %s592, 128, 128, 8
        $region40: #{tpu_custom_call.1} parent=27 // pred_fallthru
          _
        // Predicated region
        $region41: #{tpu_custom_call.1} parent=27 // pred_check
          %p625 = pneg %p140
        $region42: #{tpu_custom_call.1} parent=27 // pred_check_branch
          %627 = sbr.rel (%p625) target = $region44
        $region43: #{tpu_custom_call.1} parent=27 // pred_region
          %s628 = smul.u32 4, %s33
          %630 = vsyncadd %s597, 0
          %s631 = smul.addr %s32, 8
          %s632 = sadd.s32 %s628, %s631
          %s633 = smul.addr %s632, 8
          %s634 = scalar_lea.hbm %s3, %s633
          %s635 = sshll.u32 %s600, 4
          %s636 = int_to_ptr.vmem [resolvable:$true] %s635
          %s637 = sshll.u32 %s634, 4
          %s638 = int_to_ptr.hbm [resolvable:$true] %s637
          %643 = dma.vmem_to_hbm [thread:$0]  %s636, 512, %s638, %s597, 128, 128, 8
        $region44: #{tpu_custom_call.1} parent=27 // pred_fallthru
          _
        // Predicated region
        $region45: #{tpu_custom_call.1} parent=27 // pred_check
          %p644 = pneg %p168
        $region46: #{tpu_custom_call.1} parent=27 // pred_check_branch
          %646 = sbr.rel (%p644) target = $region48
        $region47: #{tpu_custom_call.1} parent=27 // pred_region
          %s647 = smul.u32 4, %s33
          %649 = vsyncadd %s602, 0
          %s650 = smul.addr %s32, 8
          %s651 = sadd.s32 %s647, %s650
          %s652 = smul.addr %s651, 8
          %s653 = scalar_lea.hbm %s4, %s652
          %s654 = sshll.u32 %s605, 4
          %s655 = int_to_ptr.vmem [resolvable:$true] %s654
          %s656 = sshll.u32 %s653, 4
          %s657 = int_to_ptr.hbm [resolvable:$true] %s656
          %662 = dma.vmem_to_hbm [thread:$0]  %s655, 512, %s657, %s602, 128, 128, 8
        $region48: #{tpu_custom_call.1} parent=27 // pred_fallthru
          _
      $region28: #{tpu_custom_call.1} parent=5 // pred_fallthru
        _
      %p663 = scmp.le.s32.totalorder 2, %s23
      // Predicated region
      $region49: #{tpu_custom_call.1} parent=5 // pred_check
        %p664 = pneg %p663
      $region50: #{tpu_custom_call.1} parent=5 // pred_check_branch
        %666 = sbr.rel (%p664) target = $region52
      $region51: #{tpu_custom_call.1} parent=5 // pred_region
        %s667 = ssub.s32 %s23, 2
        // Predicated region
        $region53: #{tpu_custom_call.1} parent=51 // pred_check
          %p668 = pneg %p118
        $region54: #{tpu_custom_call.1} parent=51 // pred_check_branch
          %670 = sbr.rel (%p668) target = $region56
        $region55: #{tpu_custom_call.1} parent=51 // pred_region
          %s671 = sand.u32 %s103, 1
          %s672 = scalar_lea.sflag [#allocation4], %s671
          %s673 = sand.u32 %s103, 1
          %s674 = smul.addr %s673, 32
          %s675 = scalar_lea.vmem [#allocation7], %s674
          %677 = dma.done %s672, 512
        $region56: #{tpu_custom_call.1} parent=51 // pred_fallthru
          _
        // Predicated region
        $region57: #{tpu_custom_call.1} parent=51 // pred_check
          %p678 = pneg %p146
        $region58: #{tpu_custom_call.1} parent=51 // pred_check_branch
          %680 = sbr.rel (%p678) target = $region60
        $region59: #{tpu_custom_call.1} parent=51 // pred_region
          %s681 = sand.u32 %s29, 1
          %s682 = scalar_lea.sflag [#allocation9], %s681
          %s683 = sand.u32 %s131, 1
          %s684 = smul.addr %s683, 32
          %s685 = scalar_lea.vmem [#allocation8], %s684
          %687 = dma.done %s682, 512
        $region60: #{tpu_custom_call.1} parent=51 // pred_fallthru
          _
        // Predicated region
        $region61: #{tpu_custom_call.1} parent=51 // pred_check
          %p688 = pneg %p174
        $region62: #{tpu_custom_call.1} parent=51 // pred_check_branch
          %690 = sbr.rel (%p688) target = $region64
        $region63: #{tpu_custom_call.1} parent=51 // pred_region
          %s691 = sand.u32 %s29, 1
          %s692 = scalar_lea.sflag [#allocation9], %s691
          %s693 = sand.u32 %s159, 1
          %s694 = smul.addr %s693, 32
          %s695 = scalar_lea.vmem [#allocation10], %s694
          %697 = dma.done %s692, 512
        $region64: #{tpu_custom_call.1} parent=51 // pred_fallthru
          _
      $region52: #{tpu_custom_call.1} parent=5 // pred_fallthru
        _
    $region6: #{tpu_custom_call.1} parent=1 // loop_footer
      %s27 = sadd.s32 1, %s23
    $region7: #{tpu_custom_call.1} parent=1 // loop_footer_branch
      %22 = sbr.rel target = $region3
    $region8: #{tpu_custom_call.1} parent=1 // loop_exit
      _
    %698 = vsyncpa [#allocation3], 1
    %s699 = scalar_lea.sflag [#allocation3], 1
    %700 = vsyncpa %s699, 1
    %701 = vsyncpa [#allocation6], 1
    %s702 = scalar_lea.sflag [#allocation6], 1
    %703 = vsyncpa %s702, 1
    %704 = vsyncpa [#allocation4], 1
    %s705 = scalar_lea.sflag [#allocation4], 1
    %706 = vsyncpa %s705, 1
    %707 = vsyncpa [#allocation9], 1
    %s708 = scalar_lea.sflag [#allocation9], 1
    %709 = vsyncpa %s708, 1

</llo_original>
